<compile_context>
chip_gen: v5e
topology: v5e:2x2
jax: 0.10.0
libtpu: 0.0.40
codegen_flags: <defaults>
</compile_context>

<pallas_src>
import functools

import jax
import jax.numpy as jnp
from jax.experimental import pallas as pl
from jax.experimental.pallas import tpu as pltpu


def _elu(x):
    # ELU(alpha=1): x if x > 0 else exp(x) - 1  (clamp the exp arg: jnp.where
    # evaluates both branches).
    return jnp.where(x > 0, x, jnp.exp(jnp.minimum(x, 0.0)) - 1.0)


def _sigmoid(x):
    # 1 / (1 + exp(-x)); the divide goes to the EUP via the approximate
    # reciprocal (free slot here).  exp(-x)->inf for very negative x still
    # gives 1/inf = 0, the correct limit.
    return pl.reciprocal(1.0 + jnp.exp(-x), approx=True)


def bilinear_mlp_kernel(n_cat, x_ref, m_ref, t_ref, wbr_ref, w1f_ref,
                        b1_ref, w2_ref, b2_ref, w3_ref, b3_ref, o_ref):
    f32 = jnp.float32
    mm = wbr_ref.dtype                       # bilinear-stage matmul operand dtype

    x = x_ref[...].astype(mm)                # (TB, I)
    m = m_ref[...]                           # (TB, I) f32 (elementwise path stays f32)

    # A[b, h*I + j] = sum_i x[b,i] * Wb[h,i,j]  -- the real bilinear contraction.
    a = jnp.dot(x, wbr_ref[...], preferred_element_type=f32)        # (TB, H*I)

    # m_til[b, l] = m[b, l % I]: tiny 0/1 selector matmul to a lane-aligned
    # chunk, then 128-aligned lane concatenation (whole-vreg copies; no big
    # broadcast matmul, no in-kernel reshape).
    m_w = jnp.dot(m, t_ref[...], preferred_element_type=f32)        # (TB, W)
    m_til = m_w if n_cat == 1 else jnp.concatenate([m_w] * n_cat, axis=1)

    z = (a * m_til).astype(mm)                                       # (TB, H*I)

    # First Linear with the bilinear j-reduction pre-folded into its weight
    # (z @ W1f == bilinear_out @ w1), then ELU -> Linear -> ELU -> Linear ->
    # Sigmoid, all f32 elementwise.
    h1 = _elu(jnp.dot(z, w1f_ref[...], preferred_element_type=f32) + b1_ref[...])
    h2 = _elu(jnp.dot(h1, w2_ref[...], preferred_element_type=f32) + b2_ref[...])
    # w3/b3 pre-padded to 128 output lanes -> lane-dense (unmasked) store.
    logit = jnp.dot(h2, w3_ref[...], preferred_element_type=f32) + b3_ref[...]
    o_ref[...] = _sigmoid(logit).astype(o_ref.dtype)                 # (TB, 128) bf16


def bilinear_model_forward(x, mask, params, *, block_b=512,
                           matmul_dtype=jnp.bfloat16):
    """Pallas forward for BilinearModel.

    x, mask: (B, input_size) float32.
    params: (wb, w1, b1, w2, b2, w3, b3) with wb in torch Bilinear layout
            (H, I, I), linear weights pre-transposed to (in, out), biases (1, out).
    matmul_dtype: bf16 (default) is MXU-native on v5e/v6e/v7x; accumulation and
            all elementwise math stay f32.  Pass jnp.float32 for tighter parity.
    """
    wb, w1, b1, w2, b2, w3, b3 = params
    H, I, _ = wb.shape
    B = x.shape[0]
    out_lanes = 128
    L = H * I

    # ---- wrapper-side layout plumbing (XLA, once per call) ----
    # Factored bilinear weight: Wb_r[i, h*I + j] = Wb[h, i, j].
    wb_r = jnp.transpose(wb, (1, 0, 2)).reshape(I, L).astype(matmul_dtype)
    # Bilinear per-h reduction fused into the first Linear: W1f[h*I+j, c] = w1[h, c].
    w1f = jnp.repeat(w1, I, axis=0).astype(matmul_dtype)             # (L, H2)
    # Mask lane-tiling selector: m_w[b, c] = m[b, c % I]; f32 (exact copy).
    if L % 128 == 0 and 128 % I == 0:
        W = 128                      # lane-aligned chunk -> cheap aligned concat
    else:
        W = L                        # fallback: single full-width selector
    n_cat = L // W
    t_sel = (jnp.arange(W)[None, :] % I ==
             jnp.arange(I)[:, None]).astype(jnp.float32)             # (I, W)
    # Lane-dense final layer: pad (H3, 1)->(H3, 128), (1, 1)->(1, 128).
    w3p = jnp.pad(w3.astype(jnp.float32), ((0, 0), (0, out_lanes - w3.shape[1])))
    b3p = jnp.pad(b3.astype(jnp.float32), ((0, 0), (0, out_lanes - b3.shape[1])))
    b1f = b1.astype(jnp.float32)
    w2f = w2.astype(jnp.float32)
    b2f = b2.astype(jnp.float32)

    # ---- batch tiling (TB multiple of 16 keeps the bf16 output sublane-aligned) ----
    block_b = max(16, (block_b // 16) * 16)
    tb = block_b if B >= block_b else ((B + 15) // 16) * 16
    b_pad = pl.cdiv(B, tb) * tb
    if b_pad != B:
        pad = ((0, b_pad - B), (0, 0))
        xp, mp = jnp.pad(x, pad), jnp.pad(mask, pad)
    else:
        xp, mp = x, mask
    grid = (b_pad // tb,)

    def const_spec(arr):
        return pl.BlockSpec(arr.shape, lambda i: (0, 0))    # resident across grid

    kernel = functools.partial(bilinear_mlp_kernel, n_cat)

    out = pl.pallas_call(
        kernel,
        out_shape=jax.ShapeDtypeStruct((b_pad, out_lanes), jnp.bfloat16),
        grid_spec=pltpu.PrefetchScalarGridSpec(
            num_scalar_prefetch=0,
            grid=grid,
            in_specs=[
                pl.BlockSpec((tb, I), lambda i: (i, 0)),     # x
                pl.BlockSpec((tb, I), lambda i: (i, 0)),     # mask
                const_spec(t_sel), const_spec(wb_r), const_spec(w1f),
                const_spec(b1f), const_spec(w2f), const_spec(b2f),
                const_spec(w3p), const_spec(b3p),
            ],
            out_specs=pl.BlockSpec((tb, out_lanes), lambda i: (i, 0)),
        ),
        compiler_params=pltpu.CompilerParams(
            dimension_semantics=("parallel",)),   # shards grid steps on v7x's 2 TCs
    )(xp, mp, t_sel, wb_r, w1f, b1f, w2f, b2f, w3p, b3p)

    return out[:B, :1].astype(jnp.float32)


def init_params(key, input_size, hidden_size):
    """Deterministic synthetic parameters (shapes from BilinearModel.__init__)."""
    h2 = hidden_size // 2
    h3 = hidden_size // 3
    k = jax.random.split(key, 7)

    def unif(kk, shape, fan_in):
        bound = 1.0 / jnp.sqrt(jnp.float32(fan_in))
        return jax.random.uniform(kk, shape, jnp.float32, -bound, bound)

    wb = unif(k[0], (hidden_size, input_size, input_size), input_size)  # torch Bilinear layout
    w1 = unif(k[1], (hidden_size, h2), hidden_size)                     # (in, out)
    b1 = unif(k[2], (1, h2), hidden_size)
    w2 = unif(k[3], (h2, h3), h2)
    b2 = unif(k[4], (1, h3), h2)
    w3 = unif(k[5], (h3, 1), h3)
    b3 = unif(k[6], (1, 1), h3)
    return (wb, w1, b1, w2, b2, w3, b3)


def ref_forward(x, mask, params):
    """Pure-JAX reference of the PyTorch forward."""
    wb, w1, b1, w2, b2, w3, b3 = params
    h0 = jnp.einsum('bi,hij,bj->bh', x, wb, mask)          # Bilinear, bias=False
    h1 = jax.nn.elu(h0 @ w1 + b1)
    h2 = jax.nn.elu(h1 @ w2 + b2)
    return jax.nn.sigmoid(h2 @ w3 + b3)


if __name__ == "__main__":
    batch = 40
    input_size = 32
    hidden_size = 24   # -> 12 -> 8 -> 1

    key = jax.random.PRNGKey(0)
    kx, km, kp = jax.random.split(key, 3)
    x = jax.random.normal(kx, (batch, input_size), jnp.float32)
    mask = jax.random.normal(km, (batch, input_size), jnp.float32)
    params = init_params(kp, input_size, hidden_size)

    # Small tile -> 3-step grid (exercises the pipeline / multi-TC path).
    fwd = functools.partial(bilinear_model_forward, block_b=16)

    # Tolerance covers bf16 MXU operands (f32 accumulation), the bf16 output
    # store and the EUP approximate reciprocal in the sigmoid.
    out = jax.block_until_ready(fwd(x, mask, params))
    ref = ref_forward(x, mask, params)
    assert out.shape == (batch, 1), out.shape
    assert jnp.allclose(out, ref, rtol=1e-2, atol=1e-2), (out, ref)

    # Ragged batch + default (large) tile: exercises batch padding and the
    # single-block path.
    x2, m2 = x[:13], mask[:13]
    out2 = jax.block_until_ready(bilinear_model_forward(x2, m2, params))
    ref2 = ref_forward(x2, m2, params)
    assert out2.shape == (13, 1), out2.shape
    assert jnp.allclose(out2, ref2, rtol=1e-2, atol=1e-2), (out2, ref2)

    print("KERNEL_OK")
</pallas_src>

<mosaic_0001>
module attributes {stable_mosaic.version = 11 : i64} {
  func.func @bilinear_mlp_kernel(%arg0: i32, %arg1: memref<16x32xf32, #tpu.memory_space<vmem>>, %arg2: memref<16x32xf32, #tpu.memory_space<vmem>>, %arg3: memref<32x128xf32, #tpu.memory_space<vmem>>, %arg4: memref<32x768xbf16, #tpu.memory_space<vmem>>, %arg5: memref<768x12xbf16, #tpu.memory_space<vmem>>, %arg6: memref<1x12xf32, #tpu.memory_space<vmem>>, %arg7: memref<12x8xf32, #tpu.memory_space<vmem>>, %arg8: memref<1x8xf32, #tpu.memory_space<vmem>>, %arg9: memref<8x128xf32, #tpu.memory_space<vmem>>, %arg10: memref<1x128xf32, #tpu.memory_space<vmem>>, %arg11: memref<16x128xbf16, #tpu.memory_space<vmem>>) attributes {dimension_semantics = [#tpu.dimension_semantics<parallel>], iteration_bounds = array<i64: 3>, scalar_prefetch = 0 : i64, scratch_operands = 0 : i64, tpu.core_type = #tpu.core_type<tc>, window_params = [{transform_indices = @transform_0, window_bounds = array<i64: 16, 32>}, {transform_indices = @transform_1, window_bounds = array<i64: 16, 32>}, {pipeline_mode = #tpu.pipeline_mode<synchronous>, transform_indices = @transform_2, window_bounds = array<i64: 32, 128>}, {pipeline_mode = #tpu.pipeline_mode<synchronous>, transform_indices = @transform_3, window_bounds = array<i64: 32, 768>}, {pipeline_mode = #tpu.pipeline_mode<synchronous>, transform_indices = @transform_4, window_bounds = array<i64: 768, 12>}, {pipeline_mode = #tpu.pipeline_mode<synchronous>, transform_indices = @transform_5, window_bounds = array<i64: 1, 12>}, {pipeline_mode = #tpu.pipeline_mode<synchronous>, transform_indices = @transform_6, window_bounds = array<i64: 12, 8>}, {pipeline_mode = #tpu.pipeline_mode<synchronous>, transform_indices = @transform_7, window_bounds = array<i64: 1, 8>}, {pipeline_mode = #tpu.pipeline_mode<synchronous>, transform_indices = @transform_8, window_bounds = array<i64: 8, 128>}, {pipeline_mode = #tpu.pipeline_mode<synchronous>, transform_indices = @transform_9, window_bounds = array<i64: 1, 128>}, {transform_indices = @transform_10, window_bounds = array<i64: 16, 128>}]} {
    %c0 = arith.constant 0 : index
    %c0_0 = arith.constant 0 : index
    %0 = vector.load %arg1[%c0, %c0_0] : memref<16x32xf32, #tpu.memory_space<vmem>>, vector<16x32xf32>
    %1 = arith.truncf %0 : vector<16x32xf32> to vector<16x32xbf16>
    %c0_1 = arith.constant 0 : index
    %c0_2 = arith.constant 0 : index
    %2 = vector.load %arg2[%c0_1, %c0_2] : memref<16x32xf32, #tpu.memory_space<vmem>>, vector<16x32xf32>
    %c0_3 = arith.constant 0 : index
    %c0_4 = arith.constant 0 : index
    %3 = vector.load %arg4[%c0_3, %c0_4] : memref<32x768xbf16, #tpu.memory_space<vmem>>, vector<32x768xbf16>
    %cst = arith.constant dense<0.000000e+00> : vector<16x768xf32>
    %4 = tpu.matmul %1, %3, %cst {dimension_numbers = #tpu.dot_dimension_numbers<[1], [0], [0], [1], [0, 0, 1, 1], [], []>} : vector<16x32xbf16>, vector<32x768xbf16>, vector<16x768xf32> -> vector<16x768xf32>
    %c0_5 = arith.constant 0 : index
    %c0_6 = arith.constant 0 : index
    %5 = vector.load %arg3[%c0_5, %c0_6] : memref<32x128xf32, #tpu.memory_space<vmem>>, vector<32x128xf32>
    %cst_7 = arith.constant dense<0.000000e+00> : vector<16x128xf32>
    %6 = tpu.matmul %2, %5, %cst_7 {dimension_numbers = #tpu.dot_dimension_numbers<[1], [0], [0], [1], [0, 0, 1, 1], [], []>} : vector<16x32xf32>, vector<32x128xf32>, vector<16x128xf32> -> vector<16x128xf32>
    %7 = tpu.concatenate %6, %6, %6, %6, %6, %6 in 1 : vector<16x128xf32>, vector<16x128xf32>, vector<16x128xf32>, vector<16x128xf32>, vector<16x128xf32>, vector<16x128xf32> -> vector<16x768xf32>
    %8 = arith.mulf %4, %7 : vector<16x768xf32>
    %9 = arith.truncf %8 : vector<16x768xf32> to vector<16x768xbf16>
    %c0_8 = arith.constant 0 : index
    %c0_9 = arith.constant 0 : index
    %10 = vector.load %arg5[%c0_8, %c0_9] : memref<768x12xbf16, #tpu.memory_space<vmem>>, vector<768x12xbf16>
    %cst_10 = arith.constant dense<0.000000e+00> : vector<16x12xf32>
    %11 = tpu.matmul %9, %10, %cst_10 {dimension_numbers = #tpu.dot_dimension_numbers<[1], [0], [0], [1], [0, 0, 1, 1], [], []>} : vector<16x768xbf16>, vector<768x12xbf16>, vector<16x12xf32> -> vector<16x12xf32>
    %c0_11 = arith.constant 0 : index
    %c0_12 = arith.constant 0 : index
    %12 = vector.load %arg6[%c0_11, %c0_12] : memref<1x12xf32, #tpu.memory_space<vmem>>, vector<1x12xf32>
    %13 = vector.broadcast %12 : vector<1x12xf32> to vector<16x12xf32>
    %14 = arith.addf %11, %13 : vector<16x12xf32>
    %cst_13 = arith.constant 0.000000e+00 : f32
    %15 = vector.broadcast %cst_13 : f32 to vector<16x12xf32>
    %16 = arith.cmpf ogt, %14, %15 : vector<16x12xf32>
    %cst_14 = arith.constant 0.000000e+00 : f32
    %17 = vector.broadcast %cst_14 : f32 to vector<16x12xf32>
    %18 = arith.minimumf %14, %17 : vector<16x12xf32>
    %19 = math.exp %18 : vector<16x12xf32>
    %cst_15 = arith.constant 1.000000e+00 : f32
    %20 = vector.broadcast %cst_15 : f32 to vector<16x12xf32>
    %21 = arith.subf %19, %20 : vector<16x12xf32>
    %22 = arith.select %16, %14, %21 : vector<16x12xi1>, vector<16x12xf32>
    %c0_16 = arith.constant 0 : index
    %c0_17 = arith.constant 0 : index
    %23 = vector.load %arg7[%c0_16, %c0_17] : memref<12x8xf32, #tpu.memory_space<vmem>>, vector<12x8xf32>
    %cst_18 = arith.constant dense<0.000000e+00> : vector<16x8xf32>
    %24 = tpu.matmul %22, %23, %cst_18 {dimension_numbers = #tpu.dot_dimension_numbers<[1], [0], [0], [1], [0, 0, 1, 1], [], []>} : vector<16x12xf32>, vector<12x8xf32>, vector<16x8xf32> -> vector<16x8xf32>
    %c0_19 = arith.constant 0 : index
    %c0_20 = arith.constant 0 : index
    %25 = vector.load %arg8[%c0_19, %c0_20] : memref<1x8xf32, #tpu.memory_space<vmem>>, vector<1x8xf32>
    %26 = vector.broadcast %25 : vector<1x8xf32> to vector<16x8xf32>
    %27 = arith.addf %24, %26 : vector<16x8xf32>
    %cst_21 = arith.constant 0.000000e+00 : f32
    %28 = vector.broadcast %cst_21 : f32 to vector<16x8xf32>
    %29 = arith.cmpf ogt, %27, %28 : vector<16x8xf32>
    %cst_22 = arith.constant 0.000000e+00 : f32
    %30 = vector.broadcast %cst_22 : f32 to vector<16x8xf32>
    %31 = arith.minimumf %27, %30 : vector<16x8xf32>
    %32 = math.exp %31 : vector<16x8xf32>
    %cst_23 = arith.constant 1.000000e+00 : f32
    %33 = vector.broadcast %cst_23 : f32 to vector<16x8xf32>
    %34 = arith.subf %32, %33 : vector<16x8xf32>
    %35 = arith.select %29, %27, %34 : vector<16x8xi1>, vector<16x8xf32>
    %c0_24 = arith.constant 0 : index
    %c0_25 = arith.constant 0 : index
    %36 = vector.load %arg9[%c0_24, %c0_25] : memref<8x128xf32, #tpu.memory_space<vmem>>, vector<8x128xf32>
    %cst_26 = arith.constant dense<0.000000e+00> : vector<16x128xf32>
    %37 = tpu.matmul %35, %36, %cst_26 {dimension_numbers = #tpu.dot_dimension_numbers<[1], [0], [0], [1], [0, 0, 1, 1], [], []>} : vector<16x8xf32>, vector<8x128xf32>, vector<16x128xf32> -> vector<16x128xf32>
    %c0_27 = arith.constant 0 : index
    %c0_28 = arith.constant 0 : index
    %38 = vector.load %arg10[%c0_27, %c0_28] : memref<1x128xf32, #tpu.memory_space<vmem>>, vector<1x128xf32>
    %39 = vector.broadcast %38 : vector<1x128xf32> to vector<16x128xf32>
    %40 = arith.addf %37, %39 : vector<16x128xf32>
    %cst_29 = arith.constant 0.000000e+00 : f32
    %41 = vector.broadcast %cst_29 : f32 to vector<16x128xf32>
    %42 = arith.subf %41, %40 : vector<16x128xf32>
    %43 = math.exp %42 : vector<16x128xf32>
    %cst_30 = arith.constant 1.000000e+00 : f32
    %44 = vector.broadcast %cst_30 : f32 to vector<16x128xf32>
    %45 = arith.addf %44, %43 : vector<16x128xf32>
    %46 = tpu.reciprocal %45 {approx = true} : vector<16x128xf32> -> vector<16x128xf32>
    %47 = arith.truncf %46 : vector<16x128xf32> to vector<16x128xbf16>
    %c0_31 = arith.constant 0 : index
    %c0_32 = arith.constant 0 : index
    %48 = vector.load %arg11[%c0_31, %c0_32] : memref<16x128xbf16, #tpu.memory_space<vmem>>, vector<16x128xbf16>
    tpu.vector_store %arg11[%c0_31, %c0_32], %47 {strides = array<i32>} : memref<16x128xbf16, #tpu.memory_space<vmem>>, vector<16x128xbf16>,
    return
  }
  func.func @transform_0(%arg0: i32) -> (i32, i32) {
    %c0_i32 = arith.constant 0 : i32
    %c0_i32_0 = arith.constant 0 : i32
    return %arg0, %c0_i32 : i32, i32
  }
  func.func @transform_1(%arg0: i32) -> (i32, i32) {
    %c0_i32 = arith.constant 0 : i32
    %c0_i32_0 = arith.constant 0 : i32
    return %arg0, %c0_i32 : i32, i32
  }
  func.func @transform_2(%arg0: i32) -> (i32, i32) {
    %c0_i32 = arith.constant 0 : i32
    %c0_i32_0 = arith.constant 0 : i32
    %c0_i32_1 = arith.constant 0 : i32
    return %c0_i32, %c0_i32_0 : i32, i32
  }
  func.func @transform_3(%arg0: i32) -> (i32, i32) {
    %c0_i32 = arith.constant 0 : i32
    %c0_i32_0 = arith.constant 0 : i32
    %c0_i32_1 = arith.constant 0 : i32
    return %c0_i32, %c0_i32_0 : i32, i32
  }
  func.func @transform_4(%arg0: i32) -> (i32, i32) {
    %c0_i32 = arith.constant 0 : i32
    %c0_i32_0 = arith.constant 0 : i32
    %c0_i32_1 = arith.constant 0 : i32
    return %c0_i32, %c0_i32_0 : i32, i32
  }
  func.func @transform_5(%arg0: i32) -> (i32, i32) {
    %c0_i32 = arith.constant 0 : i32
    %c0_i32_0 = arith.constant 0 : i32
    %c0_i32_1 = arith.constant 0 : i32
    return %c0_i32, %c0_i32_0 : i32, i32
  }
  func.func @transform_6(%arg0: i32) -> (i32, i32) {
    %c0_i32 = arith.constant 0 : i32
    %c0_i32_0 = arith.constant 0 : i32
    %c0_i32_1 = arith.constant 0 : i32
    return %c0_i32, %c0_i32_0 : i32, i32
  }
  func.func @transform_7(%arg0: i32) -> (i32, i32) {
    %c0_i32 = arith.constant 0 : i32
    %c0_i32_0 = arith.constant 0 : i32
    %c0_i32_1 = arith.constant 0 : i32
    return %c0_i32, %c0_i32_0 : i32, i32
  }
  func.func @transform_8(%arg0: i32) -> (i32, i32) {
    %c0_i32 = arith.constant 0 : i32
    %c0_i32_0 = arith.constant 0 : i32
    %c0_i32_1 = arith.constant 0 : i32
    return %c0_i32, %c0_i32_0 : i32, i32
  }
  func.func @transform_9(%arg0: i32) -> (i32, i32) {
    %c0_i32 = arith.constant 0 : i32
    %c0_i32_0 = arith.constant 0 : i32
    %c0_i32_1 = arith.constant 0 : i32
    return %c0_i32, %c0_i32_0 : i32, i32
  }
  func.func @transform_10(%arg0: i32) -> (i32, i32) {
    %c0_i32 = arith.constant 0 : i32
    %c0_i32_0 = arith.constant 0 : i32
    return %arg0, %c0_i32 : i32, i32
  }
}

</mosaic_0001>

<llo_original>
// kernel: tpu_custom_call.1
$region0: #{tpu_custom_call.1}
  #allocation0 [shape = 'u32[]', space=smem, size = 0x4, offset = 0x4, fixed_abs, tag = 'smem constant byte address 0x4 - core index']
  #allocation1 [shape = 'u32[72,128]{1,0:T(1,128)}', space=vmem, size = 0x9000, scoped, tag = 'internal scratch']
  %s0 = inlined_call_operand.vmem [shape: f32[48,32], index: 0, kind: input, shape index: {}]
  %s1 = inlined_call_operand.vmem [shape: f32[48,32], index: 1, kind: input, shape index: {}]
  %s2 = inlined_call_operand.vmem [shape: f32[32,128], index: 2, kind: input, shape index: {}]
  %s3 = inlined_call_operand.vmem [shape: bf16[32,768], index: 3, kind: input, shape index: {}]
  %s4 = inlined_call_operand.vmem [shape: bf16[768,12], index: 4, kind: input, shape index: {}]
  %s5 = inlined_call_operand.vmem [shape: f32[1,12], index: 5, kind: input, shape index: {}]
  %s6 = inlined_call_operand.vmem [shape: f32[12,8], index: 6, kind: input, shape index: {}]
  %s7 = inlined_call_operand.vmem [shape: f32[1,8], index: 7, kind: input, shape index: {}]
  %s8 = inlined_call_operand.vmem [shape: f32[8,128], index: 8, kind: input, shape index: {}]
  %s9 = inlined_call_operand.vmem [shape: f32[1,128], index: 9, kind: input, shape index: {}]
  %s10 = inlined_call_operand.hbm [shape: bf16[48,128], index: 10, kind: output, shape index: {}]
  %s11 = sld [smem:[#allocation0]]
  $region73: #{tpu_custom_call.1} parent=0
    _
  %s13 = ssub.s32 1, %s11
  %s14 = scalar_select 0, %s13, %s11
  $region1: #{tpu_custom_call.1} parent=0
    #allocation2 [shape = 'u8[8192]{0}', space=vmem, size = 0x2000, scoped, tag = 'output window, operand 0']
    #allocation3 [shape = 's32[2]{0}', space=sflag, size = 0x8, scoped, tag = 'scoped memory for tpu_custom_call.1']
    %15 = vsyncpa [#allocation3], 0
    %s16 = scalar_lea.sflag [#allocation3], 1
    %17 = vsyncpa %s16, 0
    loop: start=0, step=1, limit=5
    $region2: #{tpu_custom_call.1} parent=1 // loop_pre_header
      _
    $region3: #{tpu_custom_call.1} parent=1 // loop_header
      %s19 = sphi 0, %s23
      %p20 = scmp.ge.s32.totalorder %s19, 5
      %s29 = sphi 0, %s31
      %s32 = sphi 0, %s29
      %s33 = sphi 0, %s32
      %s49 = sphi 0, %s33
      %s55 = sphi 0, %s57
      %s58 = sphi 0, %s55
      %s59 = sphi 0, %s58
      %s75 = sphi 0, %s59
      %s79 = sphi 0, %s79
      %s81 = sphi 0, %s79
      %s82 = sphi 0, %s81
      %s96 = sphi 0, %s82
      %s100 = sphi 0, %s100
      %s102 = sphi 0, %s100
      %s103 = sphi 0, %s102
      %s117 = sphi 0, %s103
      %s121 = sphi 0, %s121
      %s123 = sphi 0, %s121
      %s124 = sphi 0, %s123
      %s138 = sphi 0, %s124
      %s142 = sphi 0, %s142
      %s144 = sphi 0, %s142
      %s145 = sphi 0, %s144
      %s159 = sphi 0, %s145
      %s163 = sphi 0, %s163
      %s165 = sphi 0, %s163
      %s166 = sphi 0, %s165
      %s180 = sphi 0, %s166
      %s184 = sphi 0, %s184
      %s186 = sphi 0, %s184
      %s187 = sphi 0, %s186
      %s201 = sphi 0, %s187
      %s205 = sphi 0, %s205
      %s207 = sphi 0, %s205
      %s208 = sphi 0, %s207
      %s222 = sphi 0, %s208
      %s226 = sphi 0, %s226
      %s228 = sphi 0, %s226
      %s229 = sphi 0, %s228
      %s243 = sphi 0, %s229
      %s249 = sphi 0, %s251
      %s252 = sphi 0, %s249
      %s253 = sphi 0, %s252
      %s269 = sphi 0, %s253
    $region4: #{tpu_custom_call.1} parent=1 // loop_header_branch
      %22 = sbr.rel (%p20) target = $region8
    $region5: #{tpu_custom_call.1} parent=1 // loop_body
      %s24 = ssub.s32 %s19, 1
      %s25 = ssub.s32 %s19, 2
      %s26 = sadd.s32 %s19, 1
      %s27 = ssub.s32 %s19, %s26
      %p28 = scmp.eq.s32.totalorder %s27, 0
      %s30 = sadd.s32 %s29, 1
      %s31 = scalar_select %p28, %s29, %s30
      %p34 = pneg %p28
      %p35 = scmp.eq.s32.totalorder %s19, 2
      %p36 = por %p34, %p35
      %p37 = scmp.ne.s32.totalorder %s29, %s32
      %p38 = scmp.eq.s32.totalorder %s19, 0
      %p39 = por %p37, %p38
      %p40 = scmp.ne.s32.totalorder %s29, %s32
      %p41 = scmp.eq.s32.totalorder %s24, 2
      %p42 = por %p40, %p41
      %p43 = scmp.ne.s32.totalorder %s32, %s33
      %p44 = scmp.eq.s32.totalorder %s24, 0
      %p45 = por %p43, %p44
      %p46 = scmp.ne.s32.totalorder %s32, %s33
      %p47 = scmp.eq.s32.totalorder %s25, 2
      %p48 = por %p46, %p47
      %p50 = scmp.ne.s32.totalorder %s33, %s49
      %p51 = scmp.eq.s32.totalorder %s25, 0
      %p52 = por %p50, %p51
      %s53 = ssub.s32 %s19, %s26
      %p54 = scmp.eq.s32.totalorder %s53, 0
      %s56 = sadd.s32 %s55, 1
      %s57 = scalar_select %p54, %s55, %s56
      %p60 = pneg %p54
      %p61 = scmp.eq.s32.totalorder %s19, 2
      %p62 = por %p60, %p61
      %p63 = scmp.ne.s32.totalorder %s55, %s58
      %p64 = scmp.eq.s32.totalorder %s19, 0
      %p65 = por %p63, %p64
      %p66 = scmp.ne.s32.totalorder %s55, %s58
      %p67 = scmp.eq.s32.totalorder %s24, 2
      %p68 = por %p66, %p67
      %p69 = scmp.ne.s32.totalorder %s58, %s59
      %p70 = scmp.eq.s32.totalorder %s24, 0
      %p71 = por %p69, %p70
      %p72 = scmp.ne.s32.totalorder %s58, %s59
      %p73 = scmp.eq.s32.totalorder %s25, 2
      %p74 = por %p72, %p73
      %p76 = scmp.ne.s32.totalorder %s59, %s75
      %p77 = scmp.eq.s32.totalorder %s25, 0
      %p78 = por %p76, %p77
      %s80 = sadd.s32 %s79, 1
      %p83 = scmp.eq.s32.totalorder %s19, 2
      %p84 = scmp.ne.s32.totalorder %s79, %s81
      %p85 = scmp.eq.s32.totalorder %s19, 0
      %p86 = por %p84, %p85
      %p87 = scmp.ne.s32.totalorder %s79, %s81
      %p88 = scmp.eq.s32.totalorder %s24, 2
      %p89 = por %p87, %p88
      %p90 = scmp.ne.s32.totalorder %s81, %s82
      %p91 = scmp.eq.s32.totalorder %s24, 0
      %p92 = por %p90, %p91
      %p93 = scmp.ne.s32.totalorder %s81, %s82
      %p94 = scmp.eq.s32.totalorder %s25, 2
      %p95 = por %p93, %p94
      %p97 = scmp.ne.s32.totalorder %s82, %s96
      %p98 = scmp.eq.s32.totalorder %s25, 0
      %p99 = por %p97, %p98
      %s101 = sadd.s32 %s100, 1
      %p104 = scmp.eq.s32.totalorder %s19, 2
      %p105 = scmp.ne.s32.totalorder %s100, %s102
      %p106 = scmp.eq.s32.totalorder %s19, 0
      %p107 = por %p105, %p106
      %p108 = scmp.ne.s32.totalorder %s100, %s102
      %p109 = scmp.eq.s32.totalorder %s24, 2
      %p110 = por %p108, %p109
      %p111 = scmp.ne.s32.totalorder %s102, %s103
      %p112 = scmp.eq.s32.totalorder %s24, 0
      %p113 = por %p111, %p112
      %p114 = scmp.ne.s32.totalorder %s102, %s103
      %p115 = scmp.eq.s32.totalorder %s25, 2
      %p116 = por %p114, %p115
      %p118 = scmp.ne.s32.totalorder %s103, %s117
      %p119 = scmp.eq.s32.totalorder %s25, 0
      %p120 = por %p118, %p119
      %s122 = sadd.s32 %s121, 1
      %p125 = scmp.eq.s32.totalorder %s19, 2
      %p126 = scmp.ne.s32.totalorder %s121, %s123
      %p127 = scmp.eq.s32.totalorder %s19, 0
      %p128 = por %p126, %p127
      %p129 = scmp.ne.s32.totalorder %s121, %s123
      %p130 = scmp.eq.s32.totalorder %s24, 2
      %p131 = por %p129, %p130
      %p132 = scmp.ne.s32.totalorder %s123, %s124
      %p133 = scmp.eq.s32.totalorder %s24, 0
      %p134 = por %p132, %p133
      %p135 = scmp.ne.s32.totalorder %s123, %s124
      %p136 = scmp.eq.s32.totalorder %s25, 2
      %p137 = por %p135, %p136
      %p139 = scmp.ne.s32.totalorder %s124, %s138
      %p140 = scmp.eq.s32.totalorder %s25, 0
      %p141 = por %p139, %p140
      %s143 = sadd.s32 %s142, 1
      %p146 = scmp.eq.s32.totalorder %s19, 2
      %p147 = scmp.ne.s32.totalorder %s142, %s144
      %p148 = scmp.eq.s32.totalorder %s19, 0
      %p149 = por %p147, %p148
      %p150 = scmp.ne.s32.totalorder %s142, %s144
      %p151 = scmp.eq.s32.totalorder %s24, 2
      %p152 = por %p150, %p151
      %p153 = scmp.ne.s32.totalorder %s144, %s145
      %p154 = scmp.eq.s32.totalorder %s24, 0
      %p155 = por %p153, %p154
      %p156 = scmp.ne.s32.totalorder %s144, %s145
      %p157 = scmp.eq.s32.totalorder %s25, 2
      %p158 = por %p156, %p157
      %p160 = scmp.ne.s32.totalorder %s145, %s159
      %p161 = scmp.eq.s32.totalorder %s25, 0
      %p162 = por %p160, %p161
      %s164 = sadd.s32 %s163, 1
      %p167 = scmp.eq.s32.totalorder %s19, 2
      %p168 = scmp.ne.s32.totalorder %s163, %s165
      %p169 = scmp.eq.s32.totalorder %s19, 0
      %p170 = por %p168, %p169
      %p171 = scmp.ne.s32.totalorder %s163, %s165
      %p172 = scmp.eq.s32.totalorder %s24, 2
      %p173 = por %p171, %p172
      %p174 = scmp.ne.s32.totalorder %s165, %s166
      %p175 = scmp.eq.s32.totalorder %s24, 0
      %p176 = por %p174, %p175
      %p177 = scmp.ne.s32.totalorder %s165, %s166
      %p178 = scmp.eq.s32.totalorder %s25, 2
      %p179 = por %p177, %p178
      %p181 = scmp.ne.s32.totalorder %s166, %s180
      %p182 = scmp.eq.s32.totalorder %s25, 0
      %p183 = por %p181, %p182
      %s185 = sadd.s32 %s184, 1
      %p188 = scmp.eq.s32.totalorder %s19, 2
      %p189 = scmp.ne.s32.totalorder %s184, %s186
      %p190 = scmp.eq.s32.totalorder %s19, 0
      %p191 = por %p189, %p190
      %p192 = scmp.ne.s32.totalorder %s184, %s186
      %p193 = scmp.eq.s32.totalorder %s24, 2
      %p194 = por %p192, %p193
      %p195 = scmp.ne.s32.totalorder %s186, %s187
      %p196 = scmp.eq.s32.totalorder %s24, 0
      %p197 = por %p195, %p196
      %p198 = scmp.ne.s32.totalorder %s186, %s187
      %p199 = scmp.eq.s32.totalorder %s25, 2
      %p200 = por %p198, %p199
      %p202 = scmp.ne.s32.totalorder %s187, %s201
      %p203 = scmp.eq.s32.totalorder %s25, 0
      %p204 = por %p202, %p203
      %s206 = sadd.s32 %s205, 1
      %p209 = scmp.eq.s32.totalorder %s19, 2
      %p210 = scmp.ne.s32.totalorder %s205, %s207
      %p211 = scmp.eq.s32.totalorder %s19, 0
      %p212 = por %p210, %p211
      %p213 = scmp.ne.s32.totalorder %s205, %s207
      %p214 = scmp.eq.s32.totalorder %s24, 2
      %p215 = por %p213, %p214
      %p216 = scmp.ne.s32.totalorder %s207, %s208
      %p217 = scmp.eq.s32.totalorder %s24, 0
      %p218 = por %p216, %p217
      %p219 = scmp.ne.s32.totalorder %s207, %s208
      %p220 = scmp.eq.s32.totalorder %s25, 2
      %p221 = por %p219, %p220
      %p223 = scmp.ne.s32.totalorder %s208, %s222
      %p224 = scmp.eq.s32.totalorder %s25, 0
      %p225 = por %p223, %p224
      %s227 = sadd.s32 %s226, 1
      %p230 = scmp.eq.s32.totalorder %s19, 2
      %p231 = scmp.ne.s32.totalorder %s226, %s228
      %p232 = scmp.eq.s32.totalorder %s19, 0
      %p233 = por %p231, %p232
      %p234 = scmp.ne.s32.totalorder %s226, %s228
      %p235 = scmp.eq.s32.totalorder %s24, 2
      %p236 = por %p234, %p235
      %p237 = scmp.ne.s32.totalorder %s228, %s229
      %p238 = scmp.eq.s32.totalorder %s24, 0
      %p239 = por %p237, %p238
      %p240 = scmp.ne.s32.totalorder %s228, %s229
      %p241 = scmp.eq.s32.totalorder %s25, 2
      %p242 = por %p240, %p241
      %p244 = scmp.ne.s32.totalorder %s229, %s243
      %p245 = scmp.eq.s32.totalorder %s25, 0
      %p246 = por %p244, %p245
      %s247 = ssub.s32 %s19, %s26
      %p248 = scmp.eq.s32.totalorder %s247, 0
      %s250 = sadd.s32 %s249, 1
      %s251 = scalar_select %p248, %s249, %s250
      %p254 = pneg %p248
      %p255 = scmp.eq.s32.totalorder %s19, 2
      %p256 = por %p254, %p255
      %p257 = scmp.ne.s32.totalorder %s249, %s252
      %p258 = scmp.eq.s32.totalorder %s19, 0
      %p259 = por %p257, %p258
      %p260 = scmp.ne.s32.totalorder %s249, %s252
      %p261 = scmp.eq.s32.totalorder %s24, 2
      %p262 = por %p260, %p261
      %p263 = scmp.ne.s32.totalorder %s252, %s253
      %p264 = scmp.eq.s32.totalorder %s24, 0
      %p265 = por %p263, %p264
      %p266 = scmp.ne.s32.totalorder %s252, %s253
      %p267 = scmp.eq.s32.totalorder %s25, 2
      %p268 = por %p266, %p267
      %p270 = scmp.ne.s32.totalorder %s253, %s269
      %p271 = scmp.eq.s32.totalorder %s25, 0
      %p272 = por %p270, %p271
      %p273 = scmp.le.s32.totalorder 1, %s19
      %p274 = scmp.lt.s32.totalorder %s19, 4
      %p275 = pnand %p273, %p274
      %p276 = pneg %p275
      // Predicated region
      $region9: #{tpu_custom_call.1} parent=5 // pred_check
        _
      $region10: #{tpu_custom_call.1} parent=5 // pred_check_branch
        %278 = sbr.rel (%p275) target = $region12
      $region11: #{tpu_custom_call.1} parent=5 // pred_region
        %s279 = ssub.s32 %s19, 1
        // Predicated region
        $region13: #{tpu_custom_call.1} parent=11 // pred_check
          %p280 = pneg %p92
        $region14: #{tpu_custom_call.1} parent=11 // pred_check_branch
          %282 = sbr.rel (%p280) target = $region16
        $region15: #{tpu_custom_call.1} parent=11 // pred_region
          _
        $region16: #{tpu_custom_call.1} parent=11 // pred_fallthru
          _
        // Predicated region
        $region17: #{tpu_custom_call.1} parent=11 // pred_check
          %p283 = pneg %p113
        $region18: #{tpu_custom_call.1} parent=11 // pred_check_branch
          %285 = sbr.rel (%p283) target = $region20
        $region19: #{tpu_custom_call.1} parent=11 // pred_region
          _
        $region20: #{tpu_custom_call.1} parent=11 // pred_fallthru
          _
        // Predicated region
        $region21: #{tpu_custom_call.1} parent=11 // pred_check
          %p286 = pneg %p134
        $region22: #{tpu_custom_call.1} parent=11 // pred_check_branch
          %288 = sbr.rel (%p286) target = $region24
        $region23: #{tpu_custom_call.1} parent=11 // pred_region
          _
        $region24: #{tpu_custom_call.1} parent=11 // pred_fallthru
          _
        // Predicated region
        $region25: #{tpu_custom_call.1} parent=11 // pred_check
          %p289 = pneg %p155
        $region26: #{tpu_custom_call.1} parent=11 // pred_check_branch
          %291 = sbr.rel (%p289) target = $region28
        $region27: #{tpu_custom_call.1} parent=11 // pred_region
          _
        $region28: #{tpu_custom_call.1} parent=11 // pred_fallthru
          _
        // Predicated region
        $region29: #{tpu_custom_call.1} parent=11 // pred_check
          %p292 = pneg %p176
        $region30: #{tpu_custom_call.1} parent=11 // pred_check_branch
          %294 = sbr.rel (%p292) target = $region32
        $region31: #{tpu_custom_call.1} parent=11 // pred_region
          _
        $region32: #{tpu_custom_call.1} parent=11 // pred_fallthru
          _
        // Predicated region
        $region33: #{tpu_custom_call.1} parent=11 // pred_check
          %p295 = pneg %p197
        $region34: #{tpu_custom_call.1} parent=11 // pred_check_branch
          %297 = sbr.rel (%p295) target = $region36
        $region35: #{tpu_custom_call.1} parent=11 // pred_region
          _
        $region36: #{tpu_custom_call.1} parent=11 // pred_fallthru
          _
        // Predicated region
        $region37: #{tpu_custom_call.1} parent=11 // pred_check
          %p298 = pneg %p218
        $region38: #{tpu_custom_call.1} parent=11 // pred_check_branch
          %300 = sbr.rel (%p298) target = $region40
        $region39: #{tpu_custom_call.1} parent=11 // pred_region
          _
        $region40: #{tpu_custom_call.1} parent=11 // pred_fallthru
          _
        // Predicated region
        $region41: #{tpu_custom_call.1} parent=11 // pred_check
          %p301 = pneg %p239
        $region42: #{tpu_custom_call.1} parent=11 // pred_check_branch
          %303 = sbr.rel (%p301) target = $region44
        $region43: #{tpu_custom_call.1} parent=11 // pred_region
          _
        $region44: #{tpu_custom_call.1} parent=11 // pred_fallthru
          _
      $region12: #{tpu_custom_call.1} parent=5 // pred_fallthru
        _
      %p304 = scmp.lt.s32.totalorder %s19, 3
      // Predicated region
      $region45: #{tpu_custom_call.1} parent=5 // pred_check
        %p305 = pneg %p304
      $region46: #{tpu_custom_call.1} parent=5 // pred_check_branch
        %307 = sbr.rel (%p305) target = $region48
      $region47: #{tpu_custom_call.1} parent=5 // pred_region
        // Predicated region
        $region49: #{tpu_custom_call.1} parent=47 // pred_check
          %p308 = pneg %p39
        $region50: #{tpu_custom_call.1} parent=47 // pred_check_branch
          %310 = sbr.rel (%p308) target = $region52
        $region51: #{tpu_custom_call.1} parent=47 // pred_region
          %s311 = smul.u32 2, %s19
          %p312 = scmp.lt.s32.totalorder %s311, 5
          %s313 = scalar_select %p312, %s311, 5
          %s314 = smul.addr %s313, 8
          %s315 = scalar_lea.vmem %s0, %s314
          %s316 = smul.u32 2, %s19
        $region52: #{tpu_custom_call.1} parent=47 // pred_fallthru
          _
        // Predicated region
        $region53: #{tpu_custom_call.1} parent=47 // pred_check
          %p317 = pneg %p65
        $region54: #{tpu_custom_call.1} parent=47 // pred_check_branch
          %319 = sbr.rel (%p317) target = $region56
        $region55: #{tpu_custom_call.1} parent=47 // pred_region
          %s320 = smul.u32 2, %s19
          %p321 = scmp.lt.s32.totalorder %s320, 5
          %s322 = scalar_select %p321, %s320, 5
          %s323 = smul.addr %s322, 8
          %s324 = scalar_lea.vmem %s1, %s323
          %s325 = smul.u32 2, %s19
        $region56: #{tpu_custom_call.1} parent=47 // pred_fallthru
          _
      $region48: #{tpu_custom_call.1} parent=5 // pred_fallthru
        _
      %p326 = scmp.le.s32.totalorder 1, %s19
      %p327 = scmp.lt.s32.totalorder %s19, 4
      %p328 = pnand %p326, %p327
      %p329 = pneg %p328
      // Predicated region
      $region57: #{tpu_custom_call.1} parent=5 // pred_check
        _
      $region58: #{tpu_custom_call.1} parent=5 // pred_check_branch
        %331 = sbr.rel (%p328) target = $region60
      $region59: #{tpu_custom_call.1} parent=5 // pred_region
        %s332 = ssub.s32 %s19, 1
        %s333 = smul.u32 2, %s24
        %p334 = scmp.lt.s32.totalorder %s333, 5
        %s335 = scalar_select %p334, %s333, 5
        %s336 = smul.addr %s335, 8
        %s337 = scalar_lea.vmem %s0, %s336
        %p338 = pneg %p45
        %p339 = pneg %p42
        %s340 = smul.u32 2, %s24
        %p341 = scmp.lt.s32.totalorder %s340, 5
        %s342 = scalar_select %p341, %s340, 5
        %s343 = smul.addr %s342, 8
        %s344 = scalar_lea.vmem %s1, %s343
        %p345 = pneg %p71
        %p346 = pneg %p68
        %p347 = pneg %p92
        %p348 = pneg %p89
        %p349 = pneg %p113
        %p350 = pneg %p110
        %p351 = pneg %p134
        %p352 = pneg %p131
        %p353 = pneg %p155
        %p354 = pneg %p152
        %p355 = pneg %p176
        %p356 = pneg %p173
        %p357 = pneg %p197
        %p358 = pneg %p194
        %p359 = pneg %p218
        %p360 = pneg %p215
        %p361 = pneg %p239
        %p362 = pneg %p236
        %p363 = pneg %p265
        %p364 = pneg %p262
        %s365 = sand.u32 %s252, 1
        %s366 = scalar_lea.sflag [#allocation3], %s365
        %s367 = sand.u32 %s252, 1
        %s368 = smul.addr %s367, 8
        %s369 = scalar_lea.vmem [#allocation2], %s368
        %s370 = smul.u32 2, %s24
        %p371 = scmp.lt.s32.totalorder %s370, 5
        %s372 = scalar_select %p371, %s370, 5
        %s373 = smul.addr %s372, 8
        %s374 = scalar_lea.vmem %s0, %s373
        %s375 = smul.u32 2, %s24
        %s376 = smul.u32 2, %s24
        %p377 = scmp.lt.s32.totalorder %s376, 5
        %s378 = scalar_select %p377, %s376, 5
        %s379 = smul.addr %s378, 8
        %s380 = scalar_lea.vmem %s1, %s379
        %s381 = smul.u32 2, %s24
        %s382 = smul.u32 2, %s24
        %v384 = vld [vmem:[%s374] sm:$0xff]
        %v385 = vld [vmem:[%s374 + $0x8] sm:$0xff]
        %v386 = vpack.c.bf16 %v385, %v384
        %v387 = vld [vmem:[%s380] sm:$0xff]
        %v388 = vld [vmem:[%s380 + $0x8] sm:$0xff]
        %v389 = vld [vmem:[%s3] sm:$0xff]
        %v390 = vld [vmem:[%s3 + $0x8] sm:$0xff]
        %v391 = vld [vmem:[%s3 + $0x10] sm:$0xff]
        %v392 = vld [vmem:[%s3 + $0x18] sm:$0xff]
        %v393 = vld [vmem:[%s3 + $0x20] sm:$0xff]
        %v394 = vld [vmem:[%s3 + $0x28] sm:$0xff]
        %v395 = vld [vmem:[%s3 + $0x30] sm:$0xff]
        %v396 = vld [vmem:[%s3 + $0x38] sm:$0xff]
        %v397 = vld [vmem:[%s3 + $0x40] sm:$0xff]
        %v398 = vld [vmem:[%s3 + $0x48] sm:$0xff]
        %v399 = vld [vmem:[%s3 + $0x50] sm:$0xff]
        %v400 = vld [vmem:[%s3 + $0x58] sm:$0xff]
        %v413 = vunpack.c.l.b16 %v389
        %v414 = vunpack.c.h.b16 %v389
        %v415 = vunpack.c.l.b16 %v390
        %v416 = vunpack.c.h.b16 %v390
        %v417 = vunpack.c.l.b16 %v391
        %v418 = vunpack.c.h.b16 %v391
        %v419 = vunpack.c.l.b16 %v392
        %v420 = vunpack.c.h.b16 %v392
        %v421 = vunpack.c.l.b16 %v393
        %v422 = vunpack.c.h.b16 %v393
        %v423 = vunpack.c.l.b16 %v394
        %v424 = vunpack.c.h.b16 %v394
        %v425 = vunpack.c.l.b16 %v395
        %v426 = vunpack.c.h.b16 %v395
        %v427 = vunpack.c.l.b16 %v396
        %v428 = vunpack.c.h.b16 %v396
        %v429 = vunpack.c.l.b16 %v397
        %v430 = vunpack.c.h.b16 %v397
        %v431 = vunpack.c.l.b16 %v398
        %v432 = vunpack.c.h.b16 %v398
        %v433 = vunpack.c.l.b16 %v399
        %v434 = vunpack.c.h.b16 %v399
        %v435 = vunpack.c.l.b16 %v400
        %v436 = vunpack.c.h.b16 %v400
        %v437 = vpack.c.b16 %v419, %v413
        %v438 = vpack.c.b16 %v420, %v414
        %v439 = vpack.c.b16 %v421, %v415
        %v440 = vpack.c.b16 %v422, %v416
        %v441 = vpack.c.b16 %v423, %v417
        %v442 = vpack.c.b16 %v424, %v418
        %v443 = vpack.c.b16 %v431, %v425
        %v444 = vpack.c.b16 %v432, %v426
        %v445 = vpack.c.b16 %v433, %v427
        %v446 = vpack.c.b16 %v434, %v428
        %v447 = vpack.c.b16 %v435, %v429
        %v448 = vpack.c.b16 %v436, %v430
        %vm461 = vcmask 261120
        %v463 = vsel %vm461, %v386, 0
        %465 = vmatpush.bf16.msra.mxu0 0
        %466 = vmatpush.bf16.msra.mxu0 0
        %467 = vmatpush.bf16.msra.mxu0 0
        %468 = vmatpush.bf16.msra.mxu0 0
        %469 = vmatpush.bf16.msra.mxu0 0
        %470 = vmatpush.bf16.msra.mxu0 0
        %471 = vmatpush.bf16.msra.mxu0 %v443
        %472 = vmatpush.bf16.msra.mxu0 %v437
        %473 = vmatmul.bf16.gmra.mxu0 %v463
        %v474 = vpop.f32.mrf.mxu0
        %v475 = vadd.f32 0.0, %v474
        %v476 = vpop.f32.mrf.mxu0
        %v477 = vadd.f32 0.0, %v476
        %478 = vdwg.mxu0
        %479 = vmatpush.bf16.msra.mxu0 0
        %480 = vmatpush.bf16.msra.mxu0 0
        %481 = vmatpush.bf16.msra.mxu0 0
        %482 = vmatpush.bf16.msra.mxu0 0
        %483 = vmatpush.bf16.msra.mxu0 0
        %484 = vmatpush.bf16.msra.mxu0 0
        %485 = vmatpush.bf16.msra.mxu0 %v444
        %486 = vmatpush.bf16.msra.mxu0 %v438
        %487 = vmatmul.bf16.gmra.mxu0 %v463
        %v488 = vpop.f32.mrf.mxu0
        %v489 = vadd.f32 0.0, %v488
        %v490 = vpop.f32.mrf.mxu0
        %v491 = vadd.f32 0.0, %v490
        %492 = vdwg.mxu0
        %493 = vmatpush.bf16.msra.mxu0 0
        %494 = vmatpush.bf16.msra.mxu0 0
        %495 = vmatpush.bf16.msra.mxu0 0
        %496 = vmatpush.bf16.msra.mxu0 0
        %497 = vmatpush.bf16.msra.mxu0 0
        %498 = vmatpush.bf16.msra.mxu0 0
        %499 = vmatpush.bf16.msra.mxu0 %v445
        %500 = vmatpush.bf16.msra.mxu0 %v439
        %501 = vmatmul.bf16.gmra.mxu0 %v463
        %v502 = vpop.f32.mrf.mxu0
        %v503 = vadd.f32 0.0, %v502
        %v504 = vpop.f32.mrf.mxu0
        %v505 = vadd.f32 0.0, %v504
        %506 = vdwg.mxu0
        %507 = vmatpush.bf16.msra.mxu0 0
        %508 = vmatpush.bf16.msra.mxu0 0
        %509 = vmatpush.bf16.msra.mxu0 0
        %510 = vmatpush.bf16.msra.mxu0 0
        %511 = vmatpush.bf16.msra.mxu0 0
        %512 = vmatpush.bf16.msra.mxu0 0
        %513 = vmatpush.bf16.msra.mxu0 %v446
        %514 = vmatpush.bf16.msra.mxu0 %v440
        %515 = vmatmul.bf16.gmra.mxu0 %v463
        %v516 = vpop.f32.mrf.mxu0
        %v517 = vadd.f32 0.0, %v516
        %v518 = vpop.f32.mrf.mxu0
        %v519 = vadd.f32 0.0, %v518
        %520 = vdwg.mxu0
        %521 = vmatpush.bf16.msra.mxu0 0
        %522 = vmatpush.bf16.msra.mxu0 0
        %523 = vmatpush.bf16.msra.mxu0 0
        %524 = vmatpush.bf16.msra.mxu0 0
        %525 = vmatpush.bf16.msra.mxu0 0
        %526 = vmatpush.bf16.msra.mxu0 0
        %527 = vmatpush.bf16.msra.mxu0 %v447
        %528 = vmatpush.bf16.msra.mxu0 %v441
        %529 = vmatmul.bf16.gmra.mxu0 %v463
        %v530 = vpop.f32.mrf.mxu0
        %v531 = vadd.f32 0.0, %v530
        %v532 = vpop.f32.mrf.mxu0
        %v533 = vadd.f32 0.0, %v532
        %534 = vdwg.mxu0
        %535 = vmatpush.bf16.msra.mxu0 0
        %536 = vmatpush.bf16.msra.mxu0 0
        %537 = vmatpush.bf16.msra.mxu0 0
        %538 = vmatpush.bf16.msra.mxu0 0
        %539 = vmatpush.bf16.msra.mxu0 0
        %540 = vmatpush.bf16.msra.mxu0 0
        %541 = vmatpush.bf16.msra.mxu0 %v448
        %542 = vmatpush.bf16.msra.mxu0 %v442
        %543 = vmatmul.bf16.gmra.mxu0 %v463
        %v544 = vpop.f32.mrf.mxu0
        %v545 = vadd.f32 0.0, %v544
        %v546 = vpop.f32.mrf.mxu0
        %v547 = vadd.f32 0.0, %v546
        %548 = vdwg.mxu0
        %v549 = vld [vmem:[%s2] sm:$0xff]
        %v550 = vld [vmem:[%s2 + $0x8] sm:$0xff]
        %v551 = vld [vmem:[%s2 + $0x10] sm:$0xff]
        %v552 = vld [vmem:[%s2 + $0x18] sm:$0xff]
        %v554 = vsel %vm461, %v387, 0
        %v557 = vsel %vm461, %v388, 0
        %559 = vmatpush.msra.mxu0 0.0
        %560 = vmatpush.msra.mxu0 0.0
        %561 = vmatpush.msra.mxu0 0.0
        %562 = vmatpush.msra.mxu0 0.0
        %563 = vmatpush.msra.mxu0 0.0
        %564 = vmatpush.msra.mxu0 0.0
        %565 = vmatpush.msra.mxu0 0.0
        %566 = vmatpush.msra.mxu0 0.0
        %567 = vmatpush.msra.mxu0 0.0
        %568 = vmatpush.msra.mxu0 0.0
        %569 = vmatpush.msra.mxu0 0.0
        %570 = vmatpush.msra.mxu0 0.0
        %571 = vmatpush.msra.mxu0 %v552
        %572 = vmatpush.msra.mxu0 %v551
        %573 = vmatpush.msra.mxu0 %v550
        %574 = vmatpush.msra.mxu0 %v549
        %575 = vmatmul.f32.gmra.mxu0 %v554
        %v576 = vpop.f32.mrf.mxu0
        %v577 = vadd.f32 0.0, %v576
        %578 = vmatmul.f32.gmra.mxu0 %v557
        %v579 = vpop.f32.mrf.mxu0
        %v580 = vadd.f32 0.0, %v579
        %581 = vdwg.mxu0
        %v582 = vmul.f32 %v475, %v577
        %v583 = vmul.f32 %v489, %v577
        %v584 = vmul.f32 %v503, %v577
        %v585 = vmul.f32 %v517, %v577
        %v586 = vmul.f32 %v531, %v577
        %v587 = vmul.f32 %v545, %v577
        %v588 = vmul.f32 %v477, %v580
        %v589 = vmul.f32 %v491, %v580
        %v590 = vmul.f32 %v505, %v580
        %v591 = vmul.f32 %v519, %v580
        %v592 = vmul.f32 %v533, %v580
        %v593 = vmul.f32 %v547, %v580
        %v594 = vpack.c.bf16 %v588, %v582
        %v595 = vpack.c.bf16 %v589, %v583
        %v596 = vpack.c.bf16 %v590, %v584
        %v597 = vpack.c.bf16 %v591, %v585
        %v598 = vpack.c.bf16 %v592, %v586
        %v599 = vpack.c.bf16 %v593, %v587
        %v600 = vld [vmem:[%s4] sm:$0xf]
        %v601 = vld [vmem:[%s4 + $0x4] sm:$0xf]
        %v602 = vld [vmem:[%s4 + $0x8] sm:$0xf]
        %v603 = vld [vmem:[%s4 + $0xc] sm:$0xf]
        %v604 = vld [vmem:[%s4 + $0x10] sm:$0xf]
        %v605 = vld [vmem:[%s4 + $0x14] sm:$0xf]
        %v606 = vld [vmem:[%s4 + $0x18] sm:$0xf]
        %v607 = vld [vmem:[%s4 + $0x1c] sm:$0xf]
        %v608 = vld [vmem:[%s4 + $0x20] sm:$0xf]
        %v609 = vld [vmem:[%s4 + $0x24] sm:$0xf]
        %v610 = vld [vmem:[%s4 + $0x28] sm:$0xf]
        %v611 = vld [vmem:[%s4 + $0x2c] sm:$0xf]
        %v612 = vld [vmem:[%s4 + $0x30] sm:$0xf]
        %v613 = vld [vmem:[%s4 + $0x34] sm:$0xf]
        %v614 = vld [vmem:[%s4 + $0x38] sm:$0xf]
        %v615 = vld [vmem:[%s4 + $0x3c] sm:$0xf]
        %v616 = vld [vmem:[%s4 + $0x40] sm:$0xf]
        %v617 = vld [vmem:[%s4 + $0x44] sm:$0xf]
        %v618 = vld [vmem:[%s4 + $0x48] sm:$0xf]
        %v619 = vld [vmem:[%s4 + $0x4c] sm:$0xf]
        %v620 = vld [vmem:[%s4 + $0x50] sm:$0xf]
        %v621 = vld [vmem:[%s4 + $0x54] sm:$0xf]
        %v622 = vld [vmem:[%s4 + $0x58] sm:$0xf]
        %v623 = vld [vmem:[%s4 + $0x5c] sm:$0xf]
        %v624 = vld [vmem:[%s4 + $0x60] sm:$0xf]
        %v625 = vld [vmem:[%s4 + $0x64] sm:$0xf]
        %v626 = vld [vmem:[%s4 + $0x68] sm:$0xf]
        %v627 = vld [vmem:[%s4 + $0x6c] sm:$0xf]
        %v628 = vld [vmem:[%s4 + $0x70] sm:$0xf]
        %v629 = vld [vmem:[%s4 + $0x74] sm:$0xf]
        %v630 = vld [vmem:[%s4 + $0x78] sm:$0xf]
        %v631 = vld [vmem:[%s4 + $0x7c] sm:$0xf]
        %v632 = vld [vmem:[%s4 + $0x80] sm:$0xf]
        %v633 = vld [vmem:[%s4 + $0x84] sm:$0xf]
        %v634 = vld [vmem:[%s4 + $0x88] sm:$0xf]
        %v635 = vld [vmem:[%s4 + $0x8c] sm:$0xf]
        %v636 = vld [vmem:[%s4 + $0x90] sm:$0xf]
        %v637 = vld [vmem:[%s4 + $0x94] sm:$0xf]
        %v638 = vld [vmem:[%s4 + $0x98] sm:$0xf]
        %v639 = vld [vmem:[%s4 + $0x9c] sm:$0xf]
        %v640 = vld [vmem:[%s4 + $0xa0] sm:$0xf]
        %v641 = vld [vmem:[%s4 + $0xa4] sm:$0xf]
        %v642 = vld [vmem:[%s4 + $0xa8] sm:$0xf]
        %v643 = vld [vmem:[%s4 + $0xac] sm:$0xf]
        %v644 = vld [vmem:[%s4 + $0xb0] sm:$0xf]
        %v645 = vld [vmem:[%s4 + $0xb4] sm:$0xf]
        %v646 = vld [vmem:[%s4 + $0xb8] sm:$0xf]
        %v647 = vld [vmem:[%s4 + $0xbc] sm:$0xf]
        %v648 = vld [vmem:[%s4 + $0xc0] sm:$0xf]
        %v649 = vld [vmem:[%s4 + $0xc4] sm:$0xf]
        %v650 = vld [vmem:[%s4 + $0xc8] sm:$0xf]
        %v651 = vld [vmem:[%s4 + $0xcc] sm:$0xf]
        %v652 = vld [vmem:[%s4 + $0xd0] sm:$0xf]
        %v653 = vld [vmem:[%s4 + $0xd4] sm:$0xf]
        %v654 = vld [vmem:[%s4 + $0xd8] sm:$0xf]
        %v655 = vld [vmem:[%s4 + $0xdc] sm:$0xf]
        %v656 = vld [vmem:[%s4 + $0xe0] sm:$0xf]
        %v657 = vld [vmem:[%s4 + $0xe4] sm:$0xf]
        %v658 = vld [vmem:[%s4 + $0xe8] sm:$0xf]
        %v659 = vld [vmem:[%s4 + $0xec] sm:$0xf]
        %v660 = vld [vmem:[%s4 + $0xf0] sm:$0xf]
        %v661 = vld [vmem:[%s4 + $0xf4] sm:$0xf]
        %v662 = vld [vmem:[%s4 + $0xf8] sm:$0xf]
        %v663 = vld [vmem:[%s4 + $0xfc] sm:$0xf]
        %v664 = vld [vmem:[%s4 + $0x100] sm:$0xf]
        %v665 = vld [vmem:[%s4 + $0x104] sm:$0xf]
        %v666 = vld [vmem:[%s4 + $0x108] sm:$0xf]
        %v667 = vld [vmem:[%s4 + $0x10c] sm:$0xf]
        %v668 = vld [vmem:[%s4 + $0x110] sm:$0xf]
        %v669 = vld [vmem:[%s4 + $0x114] sm:$0xf]
        %v670 = vld [vmem:[%s4 + $0x118] sm:$0xf]
        %v671 = vld [vmem:[%s4 + $0x11c] sm:$0xf]
        %v672 = vld [vmem:[%s4 + $0x120] sm:$0xf]
        %v673 = vld [vmem:[%s4 + $0x124] sm:$0xf]
        %v674 = vld [vmem:[%s4 + $0x128] sm:$0xf]
        %v675 = vld [vmem:[%s4 + $0x12c] sm:$0xf]
        %v676 = vld [vmem:[%s4 + $0x130] sm:$0xf]
        %v677 = vld [vmem:[%s4 + $0x134] sm:$0xf]
        %v678 = vld [vmem:[%s4 + $0x138] sm:$0xf]
        %v679 = vld [vmem:[%s4 + $0x13c] sm:$0xf]
        %v680 = vld [vmem:[%s4 + $0x140] sm:$0xf]
        %v681 = vld [vmem:[%s4 + $0x144] sm:$0xf]
        %v682 = vld [vmem:[%s4 + $0x148] sm:$0xf]
        %v683 = vld [vmem:[%s4 + $0x14c] sm:$0xf]
        %v684 = vld [vmem:[%s4 + $0x150] sm:$0xf]
        %v685 = vld [vmem:[%s4 + $0x154] sm:$0xf]
        %v686 = vld [vmem:[%s4 + $0x158] sm:$0xf]
        %v687 = vld [vmem:[%s4 + $0x15c] sm:$0xf]
        %v688 = vld [vmem:[%s4 + $0x160] sm:$0xf]
        %v689 = vld [vmem:[%s4 + $0x164] sm:$0xf]
        %v690 = vld [vmem:[%s4 + $0x168] sm:$0xf]
        %v691 = vld [vmem:[%s4 + $0x16c] sm:$0xf]
        %v692 = vld [vmem:[%s4 + $0x170] sm:$0xf]
        %v693 = vld [vmem:[%s4 + $0x174] sm:$0xf]
        %v694 = vld [vmem:[%s4 + $0x178] sm:$0xf]
        %v695 = vld [vmem:[%s4 + $0x17c] sm:$0xf]
        %v696 = vld [vmem:[%s5] sm:$0x1]
        %v698 = vperm.slane %v696, 0
        %v796 = vunpack.c.l.b16 %v600
        %v797 = vunpack.c.l.b16 %v601
        %v798 = vunpack.c.l.b16 %v602
        %v799 = vunpack.c.l.b16 %v603
        %v800 = vunpack.c.l.b16 %v604
        %v801 = vunpack.c.l.b16 %v605
        %v802 = vunpack.c.l.b16 %v606
        %v803 = vunpack.c.l.b16 %v607
        %v804 = vunpack.c.l.b16 %v608
        %v805 = vunpack.c.l.b16 %v609
        %v806 = vunpack.c.l.b16 %v610
        %v807 = vunpack.c.l.b16 %v611
        %v808 = vunpack.c.l.b16 %v612
        %v809 = vunpack.c.l.b16 %v613
        %v810 = vunpack.c.l.b16 %v614
        %v811 = vunpack.c.l.b16 %v615
        %v812 = vunpack.c.l.b16 %v616
        %v813 = vunpack.c.l.b16 %v617
        %v814 = vunpack.c.l.b16 %v618
        %v815 = vunpack.c.l.b16 %v619
        %v816 = vunpack.c.l.b16 %v620
        %v817 = vunpack.c.l.b16 %v621
        %v818 = vunpack.c.l.b16 %v622
        %v819 = vunpack.c.l.b16 %v623
        %v820 = vunpack.c.l.b16 %v624
        %v821 = vunpack.c.l.b16 %v625
        %v822 = vunpack.c.l.b16 %v626
        %v823 = vunpack.c.l.b16 %v627
        %v824 = vunpack.c.l.b16 %v628
        %v825 = vunpack.c.l.b16 %v629
        %v826 = vunpack.c.l.b16 %v630
        %v827 = vunpack.c.l.b16 %v631
        %v828 = vunpack.c.l.b16 %v632
        %v829 = vunpack.c.l.b16 %v633
        %v830 = vunpack.c.l.b16 %v634
        %v831 = vunpack.c.l.b16 %v635
        %v832 = vunpack.c.l.b16 %v636
        %v833 = vunpack.c.l.b16 %v637
        %v834 = vunpack.c.l.b16 %v638
        %v835 = vunpack.c.l.b16 %v639
        %v836 = vunpack.c.l.b16 %v640
        %v837 = vunpack.c.l.b16 %v641
        %v838 = vunpack.c.l.b16 %v642
        %v839 = vunpack.c.l.b16 %v643
        %v840 = vunpack.c.l.b16 %v644
        %v841 = vunpack.c.l.b16 %v645
        %v842 = vunpack.c.l.b16 %v646
        %v843 = vunpack.c.l.b16 %v647
        %v844 = vunpack.c.l.b16 %v648
        %v845 = vunpack.c.l.b16 %v649
        %v846 = vunpack.c.l.b16 %v650
        %v847 = vunpack.c.l.b16 %v651
        %v848 = vunpack.c.l.b16 %v652
        %v849 = vunpack.c.l.b16 %v653
        %v850 = vunpack.c.l.b16 %v654
        %v851 = vunpack.c.l.b16 %v655
        %v852 = vunpack.c.l.b16 %v656
        %v853 = vunpack.c.l.b16 %v657
        %v854 = vunpack.c.l.b16 %v658
        %v855 = vunpack.c.l.b16 %v659
        %v856 = vunpack.c.l.b16 %v660
        %v857 = vunpack.c.l.b16 %v661
        %v858 = vunpack.c.l.b16 %v662
        %v859 = vunpack.c.l.b16 %v663
        %v860 = vunpack.c.l.b16 %v664
        %v861 = vunpack.c.l.b16 %v665
        %v862 = vunpack.c.l.b16 %v666
        %v863 = vunpack.c.l.b16 %v667
        %v864 = vunpack.c.l.b16 %v668
        %v865 = vunpack.c.l.b16 %v669
        %v866 = vunpack.c.l.b16 %v670
        %v867 = vunpack.c.l.b16 %v671
        %v868 = vunpack.c.l.b16 %v672
        %v869 = vunpack.c.l.b16 %v673
        %v870 = vunpack.c.l.b16 %v674
        %v871 = vunpack.c.l.b16 %v675
        %v872 = vunpack.c.l.b16 %v676
        %v873 = vunpack.c.l.b16 %v677
        %v874 = vunpack.c.l.b16 %v678
        %v875 = vunpack.c.l.b16 %v679
        %v876 = vunpack.c.l.b16 %v680
        %v877 = vunpack.c.l.b16 %v681
        %v878 = vunpack.c.l.b16 %v682
        %v879 = vunpack.c.l.b16 %v683
        %v880 = vunpack.c.l.b16 %v684
        %v881 = vunpack.c.l.b16 %v685
        %v882 = vunpack.c.l.b16 %v686
        %v883 = vunpack.c.l.b16 %v687
        %v884 = vunpack.c.l.b16 %v688
        %v885 = vunpack.c.l.b16 %v689
        %v886 = vunpack.c.l.b16 %v690
        %v887 = vunpack.c.l.b16 %v691
        %v888 = vunpack.c.l.b16 %v692
        %v889 = vunpack.c.l.b16 %v693
        %v890 = vunpack.c.l.b16 %v694
        %v891 = vunpack.c.l.b16 %v695
        %v892 = vpack.c.b16 %v797, %v796
        %v893 = vpack.c.b16 %v799, %v798
        %v894 = vpack.c.b16 %v801, %v800
        %v895 = vpack.c.b16 %v803, %v802
        %v896 = vpack.c.b16 %v805, %v804
        %v897 = vpack.c.b16 %v807, %v806
        %v898 = vpack.c.b16 %v809, %v808
        %v899 = vpack.c.b16 %v811, %v810
        %v900 = vpack.c.b16 %v813, %v812
        %v901 = vpack.c.b16 %v815, %v814
        %v902 = vpack.c.b16 %v817, %v816
        %v903 = vpack.c.b16 %v819, %v818
        %v904 = vpack.c.b16 %v821, %v820
        %v905 = vpack.c.b16 %v823, %v822
        %v906 = vpack.c.b16 %v825, %v824
        %v907 = vpack.c.b16 %v827, %v826
        %v908 = vpack.c.b16 %v829, %v828
        %v909 = vpack.c.b16 %v831, %v830
        %v910 = vpack.c.b16 %v833, %v832
        %v911 = vpack.c.b16 %v835, %v834
        %v912 = vpack.c.b16 %v837, %v836
        %v913 = vpack.c.b16 %v839, %v838
        %v914 = vpack.c.b16 %v841, %v840
        %v915 = vpack.c.b16 %v843, %v842
        %v916 = vpack.c.b16 %v845, %v844
        %v917 = vpack.c.b16 %v847, %v846
        %v918 = vpack.c.b16 %v849, %v848
        %v919 = vpack.c.b16 %v851, %v850
        %v920 = vpack.c.b16 %v853, %v852
        %v921 = vpack.c.b16 %v855, %v854
        %v922 = vpack.c.b16 %v857, %v856
        %v923 = vpack.c.b16 %v859, %v858
        %v924 = vpack.c.b16 %v861, %v860
        %v925 = vpack.c.b16 %v863, %v862
        %v926 = vpack.c.b16 %v865, %v864
        %v927 = vpack.c.b16 %v867, %v866
        %v928 = vpack.c.b16 %v869, %v868
        %v929 = vpack.c.b16 %v871, %v870
        %v930 = vpack.c.b16 %v873, %v872
        %v931 = vpack.c.b16 %v875, %v874
        %v932 = vpack.c.b16 %v877, %v876
        %v933 = vpack.c.b16 %v879, %v878
        %v934 = vpack.c.b16 %v881, %v880
        %v935 = vpack.c.b16 %v883, %v882
        %v936 = vpack.c.b16 %v885, %v884
        %v937 = vpack.c.b16 %v887, %v886
        %v938 = vpack.c.b16 %v889, %v888
        %v939 = vpack.c.b16 %v891, %v890
        %988 = vmatpush.bf16.msra.mxu0 %v899
        %989 = vmatpush.bf16.msra.mxu0 %v898
        %990 = vmatpush.bf16.msra.mxu0 %v897
        %991 = vmatpush.bf16.msra.mxu0 %v896
        %992 = vmatpush.bf16.msra.mxu0 %v895
        %993 = vmatpush.bf16.msra.mxu0 %v894
        %994 = vmatpush.bf16.msra.mxu0 %v893
        %995 = vmatpush.bf16.msra.mxu0 %v892
        %996 = vmatmul.bf16.gmra.mxu0 %v594
        %v997 = vpop.f32.mrf.mxu0
        %v998 = vadd.f32 %v698, %v997
        %v999 = vpop.f32.mrf.mxu0
        %v1000 = vadd.f32 %v698, %v999
        %1001 = vdwg.mxu0
        %1002 = vmatpush.bf16.msra.mxu0 %v907
        %1003 = vmatpush.bf16.msra.mxu0 %v906
        %1004 = vmatpush.bf16.msra.mxu0 %v905
        %1005 = vmatpush.bf16.msra.mxu0 %v904
        %1006 = vmatpush.bf16.msra.mxu0 %v903
        %1007 = vmatpush.bf16.msra.mxu0 %v902
        %1008 = vmatpush.bf16.msra.mxu0 %v901
        %1009 = vmatpush.bf16.msra.mxu0 %v900
        %1010 = vmatmul.bf16.gmra.mxu0 %v595
        %v1011 = vpop.f32.mrf.mxu0
        %v1012 = vadd.f32 %v998, %v1011
        %v1013 = vpop.f32.mrf.mxu0
        %v1014 = vadd.f32 %v1000, %v1013
        %1015 = vdwg.mxu0
        %1016 = vmatpush.bf16.msra.mxu0 %v915
        %1017 = vmatpush.bf16.msra.mxu0 %v914
        %1018 = vmatpush.bf16.msra.mxu0 %v913
        %1019 = vmatpush.bf16.msra.mxu0 %v912
        %1020 = vmatpush.bf16.msra.mxu0 %v911
        %1021 = vmatpush.bf16.msra.mxu0 %v910
        %1022 = vmatpush.bf16.msra.mxu0 %v909
        %1023 = vmatpush.bf16.msra.mxu0 %v908
        %1024 = vmatmul.bf16.gmra.mxu0 %v596
        %v1025 = vpop.f32.mrf.mxu0
        %v1026 = vadd.f32 %v1012, %v1025
        %v1027 = vpop.f32.mrf.mxu0
        %v1028 = vadd.f32 %v1014, %v1027
        %1029 = vdwg.mxu0
        %1030 = vmatpush.bf16.msra.mxu0 %v923
        %1031 = vmatpush.bf16.msra.mxu0 %v922
        %1032 = vmatpush.bf16.msra.mxu0 %v921
        %1033 = vmatpush.bf16.msra.mxu0 %v920
        %1034 = vmatpush.bf16.msra.mxu0 %v919
        %1035 = vmatpush.bf16.msra.mxu0 %v918
        %1036 = vmatpush.bf16.msra.mxu0 %v917
        %1037 = vmatpush.bf16.msra.mxu0 %v916
        %1038 = vmatmul.bf16.gmra.mxu0 %v597
        %v1039 = vpop.f32.mrf.mxu0
        %v1040 = vadd.f32 %v1026, %v1039
        %v1041 = vpop.f32.mrf.mxu0
        %v1042 = vadd.f32 %v1028, %v1041
        %1043 = vdwg.mxu0
        %1044 = vmatpush.bf16.msra.mxu0 %v931
        %1045 = vmatpush.bf16.msra.mxu0 %v930
        %1046 = vmatpush.bf16.msra.mxu0 %v929
        %1047 = vmatpush.bf16.msra.mxu0 %v928
        %1048 = vmatpush.bf16.msra.mxu0 %v927
        %1049 = vmatpush.bf16.msra.mxu0 %v926
        %1050 = vmatpush.bf16.msra.mxu0 %v925
        %1051 = vmatpush.bf16.msra.mxu0 %v924
        %1052 = vmatmul.bf16.gmra.mxu0 %v598
        %v1053 = vpop.f32.mrf.mxu0
        %v1054 = vadd.f32 %v1040, %v1053
        %v1055 = vpop.f32.mrf.mxu0
        %v1056 = vadd.f32 %v1042, %v1055
        %1057 = vdwg.mxu0
        %1058 = vmatpush.bf16.msra.mxu0 %v939
        %1059 = vmatpush.bf16.msra.mxu0 %v938
        %1060 = vmatpush.bf16.msra.mxu0 %v937
        %1061 = vmatpush.bf16.msra.mxu0 %v936
        %1062 = vmatpush.bf16.msra.mxu0 %v935
        %1063 = vmatpush.bf16.msra.mxu0 %v934
        %1064 = vmatpush.bf16.msra.mxu0 %v933
        %1065 = vmatpush.bf16.msra.mxu0 %v932
        %1066 = vmatmul.bf16.gmra.mxu0 %v599
        %v1067 = vpop.f32.mrf.mxu0
        %v1068 = vadd.f32 %v1054, %v1067
        %v1069 = vpop.f32.mrf.mxu0
        %v1070 = vadd.f32 %v1056, %v1069
        %1071 = vdwg.mxu0
        %vm1072 = vcmp.gt.f32.partialorder %v1068, 0.0
        %vm1073 = vcmp.gt.f32.partialorder %v1070, 0.0
        %v1074 = vmin.f32 %v1068, 0.0
        %v1075 = vmin.f32 %v1070, 0.0
        %v1076 = vmul.f32 %v1074, 1.442695
        %v1077 = vpow.pop %v1076
        %v1078 = vmul.f32 %v1075, 1.442695
        %v1079 = vpow.pop %v1078
        %v1080 = vsub.f32 %v1077, 1.0
        %v1081 = vsub.f32 %v1079, 1.0
        %v1082 = vsel %vm1072, %v1068, %v1080
        %v1083 = vsel %vm1073, %v1070, %v1081
        %v1084 = vld [vmem:[%s6] sm:$0xff]
        %v1085 = vld [vmem:[%s6 + $0x8] sm:$0xf]
        %v1086 = vld [vmem:[%s7] sm:$0x1]
        %v1088 = vperm.slane %v1086, 0
        %vm1090 = vcmask 97280
        %v1092 = vsel %vm1090, %v1082, 0
        %v1095 = vsel %vm1090, %v1083, 0
        %vm1097 = vcmask 1043456
        %v1099 = vsel %vm1097, %v1085, 0
        %1101 = vmatpush.msra.mxu0 0.0
        %1102 = vmatpush.msra.mxu0 0.0
        %1103 = vmatpush.msra.mxu0 0.0
        %1104 = vmatpush.msra.mxu0 0.0
        %1105 = vmatpush.msra.mxu0 0.0
        %1106 = vmatpush.msra.mxu0 0.0
        %1107 = vmatpush.msra.mxu0 0.0
        %1108 = vmatpush.msra.mxu0 0.0
        %1109 = vmatpush.msra.mxu0 0.0
        %1110 = vmatpush.msra.mxu0 0.0
        %1111 = vmatpush.msra.mxu0 0.0
        %1112 = vmatpush.msra.mxu0 0.0
        %1113 = vmatpush.msra.mxu0 0.0
        %1114 = vmatpush.msra.mxu0 0.0
        %1115 = vmatpush.msra.mxu0 %v1099
        %1116 = vmatpush.msra.mxu0 %v1084
        %1117 = vmatmul.f32.gmra.mxu0 %v1092
        %v1118 = vpop.f32.mrf.mxu0
        %v1119 = vadd.f32 %v1088, %v1118
        %1120 = vmatmul.f32.gmra.mxu0 %v1095
        %v1121 = vpop.f32.mrf.mxu0
        %v1122 = vadd.f32 %v1088, %v1121
        %1123 = vdwg.mxu0
        %vm1124 = vcmp.gt.f32.partialorder %v1119, 0.0
        %vm1125 = vcmp.gt.f32.partialorder %v1122, 0.0
        %v1126 = vmin.f32 %v1119, 0.0
        %v1127 = vmin.f32 %v1122, 0.0
        %v1128 = vmul.f32 %v1126, 1.442695
        %v1129 = vpow.pop %v1128
        %v1130 = vmul.f32 %v1127, 1.442695
        %v1131 = vpow.pop %v1130
        %v1132 = vsub.f32 %v1129, 1.0
        %v1133 = vsub.f32 %v1131, 1.0
        %v1134 = vsel %vm1124, %v1119, %v1132
        %v1135 = vsel %vm1125, %v1122, %v1133
        %v1136 = vld [vmem:[%s8] sm:$0xff]
        %v1137 = vld [vmem:[%s9] sm:$0x1]
        %v1139 = vperm.slane %v1137, 0
        %vm1141 = vcmask 64512
        %v1143 = vsel %vm1141, %v1134, 0
        %v1146 = vsel %vm1141, %v1135, 0
        %1148 = vmatpush.msra.mxu0 0.0
        %1149 = vmatpush.msra.mxu0 0.0
        %1150 = vmatpush.msra.mxu0 0.0
        %1151 = vmatpush.msra.mxu0 0.0
        %1152 = vmatpush.msra.mxu0 0.0
        %1153 = vmatpush.msra.mxu0 0.0
        %1154 = vmatpush.msra.mxu0 0.0
        %1155 = vmatpush.msra.mxu0 0.0
        %1156 = vmatpush.msra.mxu0 0.0
        %1157 = vmatpush.msra.mxu0 0.0
        %1158 = vmatpush.msra.mxu0 0.0
        %1159 = vmatpush.msra.mxu0 0.0
        %1160 = vmatpush.msra.mxu0 0.0
        %1161 = vmatpush.msra.mxu0 0.0
        %1162 = vmatpush.msra.mxu0 0.0
        %1163 = vmatpush.msra.mxu0 %v1136
        %1164 = vmatmul.f32.gmra.mxu0 %v1143
        %v1165 = vpop.f32.mrf.mxu0
        %v1166 = vadd.f32 %v1139, %v1165
        %1167 = vmatmul.f32.gmra.mxu0 %v1146
        %v1168 = vpop.f32.mrf.mxu0
        %v1169 = vadd.f32 %v1139, %v1168
        %1170 = vdwg.mxu0
        %v1171 = vsub.f32 0.0, %v1166
        %v1172 = vsub.f32 0.0, %v1169
        %v1173 = vmul.f32 %v1171, 1.442695
        %v1174 = vpow.pop %v1173
        %v1175 = vmul.f32 %v1172, 1.442695
        %v1176 = vpow.pop %v1175
        %v1177 = vadd.f32 %v1174, 1.0
        %v1178 = vadd.f32 %v1176, 1.0
        %v1179 = vrcp.pop %v1177
        %v1180 = vrcp.pop %v1178
        %v1181 = vpack.c.bf16 %v1179, %v1179
        %v1182 = vpack.c.bf16 %v1180, %v1180
        %1183 = vst [vmem:[%s369] sm:$0xf] %v1181
        %1184 = vst [vmem:[%s369 + $0x4] sm:$0xf] %v1182
        %s1185 = sand.u32 %s252, 1
        %s1186 = scalar_lea.sflag [#allocation3], %s1185
        %s1187 = sand.u32 %s252, 1
        %s1188 = smul.addr %s1187, 8
        %s1189 = scalar_lea.vmem [#allocation2], %s1188
        // Predicated region
        $region61: #{tpu_custom_call.1} parent=59 // pred_check
          %p1190 = pneg %p262
        $region62: #{tpu_custom_call.1} parent=59 // pred_check_branch
          %1192 = sbr.rel (%p1190) target = $region64
        $region63: #{tpu_custom_call.1} parent=59 // pred_region
          %s1193 = smul.u32 2, %s24
          %1195 = vsyncadd %s1186, 0
          %s1196 = smul.addr %s1193, 4
          %s1197 = scalar_lea.hbm %s10, %s1196
          %s1198 = sshll.u32 %s1189, 4
          %s1199 = int_to_ptr.vmem [resolvable:$true] %s1198
          %s1200 = sshll.u32 %s1197, 4
          %s1201 = int_to_ptr.hbm [resolvable:$true] %s1200
          %1206 = dma.vmem_to_hbm [thread:$0]  %s1199, 128, %s1201, %s1186, 64, 64, 4
        $region64: #{tpu_custom_call.1} parent=59 // pred_fallthru
          _
      $region60: #{tpu_custom_call.1} parent=5 // pred_fallthru
        _
      %p1207 = scmp.le.s32.totalorder 2, %s19
      // Predicated region
      $region65: #{tpu_custom_call.1} parent=5 // pred_check
        %p1208 = pneg %p1207
      $region66: #{tpu_custom_call.1} parent=5 // pred_check_branch
        %1210 = sbr.rel (%p1208) target = $region68
      $region67: #{tpu_custom_call.1} parent=5 // pred_region
        %s1211 = ssub.s32 %s19, 2
        // Predicated region
        $region69: #{tpu_custom_call.1} parent=67 // pred_check
          %p1212 = pneg %p268
        $region70: #{tpu_custom_call.1} parent=67 // pred_check_branch
          %1214 = sbr.rel (%p1212) target = $region72
        $region71: #{tpu_custom_call.1} parent=67 // pred_region
          %s1215 = sand.u32 %s253, 1
          %s1216 = scalar_lea.sflag [#allocation3], %s1215
          %s1217 = sand.u32 %s253, 1
          %s1218 = smul.addr %s1217, 8
          %s1219 = scalar_lea.vmem [#allocation2], %s1218
          %1221 = dma.done %s1216, 128
        $region72: #{tpu_custom_call.1} parent=67 // pred_fallthru
          _
      $region68: #{tpu_custom_call.1} parent=5 // pred_fallthru
        _
    $region6: #{tpu_custom_call.1} parent=1 // loop_footer
      %s23 = sadd.s32 1, %s19
    $region7: #{tpu_custom_call.1} parent=1 // loop_footer_branch
      %18 = sbr.rel target = $region3
    $region8: #{tpu_custom_call.1} parent=1 // loop_exit
      _
    %1222 = vsyncpa [#allocation3], 1
    %s1223 = scalar_lea.sflag [#allocation3], 1
    %1224 = vsyncpa %s1223, 1

</llo_original>
